<compile_context>
chip_gen: v7x
topology: tpu7x:2x2x1
jax: 0.10.0
libtpu: 0.0.40
codegen_flags: <defaults>
</compile_context>

<pallas_src>
import functools

import jax
import jax.numpy as jnp
from jax import lax
from jax.experimental import pallas as pl
from jax.experimental.pallas import tpu as pltpu


def _round_up(x, m):
    return (x + m - 1) // m * m


# ------------------------------ Pallas kernel -------------------------------


def _focal_loss_kernel(x_ref, pos_ref, w_ref, e_ref, s_ref, out_ref, *, alpha, gamma):
    x = x_ref[...].astype(jnp.float32)   # (tnf, L) folded log-probs
    pos = pos_ref[...]                   # (tnf, f) f32 flat label positions (-1 = padding)
    w = w_ref[...]                       # (1, L)   class weights tiled f times over lanes
    e = e_ref[...]                       # (f, L)   expansion matrix  E[j, l] = [l // C == j]
    s = s_ref[...]                       # (L, f)   segmented-lane-sum matrix (S = E.T)

    tnf, L = x.shape

    # Expand each sub-row's flat label position across its C-lane block (MXU,
    # exact for small integers and the -1 sentinel), then build the one-hot.
    target = jnp.dot(pos, e, preferred_element_type=jnp.float32)          # (tnf, L)
    lane = lax.broadcasted_iota(jnp.int32, (tnf, L), 1).astype(jnp.float32)
    onehot = lane == target                       # padding/sentinel rows: all False

    # Fused weight multiply + select (single masked pass over the tile).
    masked = jnp.where(onehot, x * w, 0.0)        # w[y] * x[:, y] at picked lanes
    # Per-sub-row sum of the single picked lane in each C-block (MXU).
    picked = jnp.dot(masked, s, preferred_element_type=jnp.float32)       # (tnf, f)

    logp = -picked                                # NLLLoss(reduction='none'); 0 for pad rows
    p = jnp.exp(picked)                           # exp(-logp): one EUP op per row
    one_m_p = 1.0 - p

    g = float(gamma)
    if g == int(g):
        focal = lax.integer_pow(one_m_p, int(g))  # plain VPU multiplies
    else:
        # NOTE: clamps negative bases (possible only with negative class
        # weights) to 0 where PyTorch's pow would produce NaN.
        focal = jnp.power(jnp.maximum(one_m_p, 0.0), g)

    loss = alpha * focal * logp                   # 0 for padding rows (logp=0, focal=0)

    # Per-block partial sum written to this step's own output block so the
    # grid axis can be "parallel" (no revisited accumulator).
    part = jnp.sum(loss, keepdims=True)           # (1, 1)
    out_ref[...] = jnp.broadcast_to(part, (8, 128)).astype(out_ref.dtype)


# ------------------------------- JAX wrapper ---------------------------------


@functools.partial(
    jax.jit, static_argnames=("alpha", "gamma", "reduction", "tile_bytes"))
def focal_loss(output, label, weight=None, *, alpha=0.25, gamma=2,
               reduction="mean", tile_bytes=8 * 1024 * 1024):
    """FocalLoss forward. `output` is (N, C) log-probs, `label` is (N,) ints.

    Note: 'mean' divides by N (== NLLLoss(reduction='none') followed by
    .mean()), matching the PyTorch module, not NLLLoss's weight-normalized
    'mean' semantics.
    """
    output = jnp.asarray(output)
    if not jnp.issubdtype(output.dtype, jnp.floating):
        output = output.astype(jnp.float32)       # keep bf16/f32 as-is (no upcast)
    label = jnp.asarray(label, jnp.int32)
    n, c = output.shape

    # ---- lane-dense class folding: (N, C) -> (Nf, f*C), byte-identical ----
    f = max(1, 128 // c)
    L = f * c
    n_fold = _round_up(n, f)
    if n_fold != n:
        # Minimal (< f rows) zero pad so the zero-copy fold reshape is legal.
        # Padded rows contribute exactly 0 loss (position sentinel below).
        output = jnp.pad(output, ((0, n_fold - n), (0, 0)))
    nf = n_fold // f
    xf = output.reshape(nf, L)

    # ---- tile sizing: MiB-scale DMA payloads, sized from this chip's VMEM ----
    itemsize = jnp.dtype(output.dtype).itemsize
    try:
        vmem_cap = int(pltpu.get_tpu_info().vmem_capacity_bytes)
    except Exception:  # interpret mode / unknown chip
        vmem_cap = 64 * 1024 * 1024
    tile_target = max(4096, min(int(tile_bytes), vmem_cap // 10))
    bytes_per_row = L * itemsize + 4 * f                 # x tile row + pos tile row
    sub = 8 if itemsize >= 4 else (16 if itemsize == 2 else 32)
    rows_cap = max(sub, (tile_target // bytes_per_row) // sub * sub)
    if nf <= rows_cap:
        tnf, num_blocks = nf, 1
    else:
        tnf = rows_cap
        num_blocks = pl.cdiv(nf, tnf)

    # ---- small per-row / per-class side inputs ----
    # Flat label positions j*C + y for each sub-row j of a folded row; -1
    # sentinel marks rows past N (fold pad + ragged last grid block) so they
    # match no lane and contribute exactly 0 loss even over garbage x reads.
    covered = num_blocks * tnf * f
    lbl_full = jnp.concatenate(
        [label, jnp.full((covered - n,), -1, jnp.int32)])
    sub_idx = jnp.arange(covered, dtype=jnp.int32) % f
    pos = jnp.where(lbl_full >= 0, lbl_full + c * sub_idx, -1)
    pos = pos.astype(jnp.float32).reshape(num_blocks * tnf, f)

    if weight is None:
        w_row = jnp.ones((1, L), jnp.float32)
    else:
        w_row = jnp.tile(jnp.asarray(weight, jnp.float32).reshape(c), (f,)).reshape(1, L)

    blk = jnp.arange(L, dtype=jnp.int32) // c
    e_mat = (blk[None, :] == jnp.arange(f, dtype=jnp.int32)[:, None]).astype(jnp.float32)
    s_mat = e_mat.T                                      # (L, f)

    g = float(gamma)
    kernel = functools.partial(_focal_loss_kernel, alpha=float(alpha), gamma=gamma)
    partials = pl.pallas_call(
        kernel,
        out_shape=jax.ShapeDtypeStruct((num_blocks * 8, 128), jnp.float32),
        grid_spec=pltpu.PrefetchScalarGridSpec(
            num_scalar_prefetch=0,
            grid=(num_blocks,),
            in_specs=[
                pl.BlockSpec((tnf, L), lambda i: (i, 0)),    # folded log-prob tile
                pl.BlockSpec((tnf, f), lambda i: (i, 0)),    # flat label positions
                pl.BlockSpec((1, L), lambda i: (0, 0)),      # class weights (resident)
                pl.BlockSpec((f, L), lambda i: (0, 0)),      # expansion matrix (resident)
                pl.BlockSpec((L, f), lambda i: (0, 0)),      # segmented-sum matrix (resident)
            ],
            out_specs=pl.BlockSpec((8, 128), lambda i: (i, 0)),
        ),
        compiler_params=pltpu.CompilerParams(
            dimension_semantics=("parallel",),
            vmem_limit_bytes=int(min(vmem_cap // 2,
                                     max(32 * 1024 * 1024, 4 * tile_target))),
        ),
        cost_estimate=pl.CostEstimate(
            flops=int(nf * (4 * f * L + 6 * L + 10 * f)),
            transcendentals=int(n_fold * (1 if g == int(g) else 3)),
            bytes_accessed=int(nf * L * itemsize + covered * 4
                               + num_blocks * 8 * 128 * 4),
        ),
    )(xf, pos, w_row, e_mat, s_mat)

    total = jnp.sum(partials.reshape(num_blocks, 8, 128)[:, 0, 0])
    if reduction == "mean":
        return total / n
    elif reduction == "sum":
        return total
    else:
        # The PyTorch module silently returns None for any other reduction.
        raise ValueError(f"unsupported reduction: {reduction!r}")


# ---------------------------- pure-JAX reference -----------------------------


def _focal_loss_ref(output, label, weight=None, alpha=0.25, gamma=2,
                    reduction="mean"):
    x = jnp.asarray(output, jnp.float32)
    picked = jnp.take_along_axis(x, label[:, None].astype(jnp.int32), axis=1)[:, 0]
    logp = -picked
    if weight is not None:
        logp = logp * jnp.asarray(weight, jnp.float32)[label]
    p = jnp.exp(-logp)
    loss = alpha * (1.0 - p) ** float(gamma) * logp
    return loss.mean() if reduction == "mean" else loss.sum()


def _check(name, got, want):
    got, want = float(got), float(want)
    if abs(got - want) > 1e-4 * max(1.0, abs(want)):
        raise AssertionError(f"{name}: got {got}, want {want}")


# ----------------------------------- main ------------------------------------


if __name__ == "__main__":
    key = jax.random.PRNGKey(0)
    k1, k2, k3, k4, k5, k6, k7 = jax.random.split(key, 7)

    # Case 1: small default FocalLoss(alpha=0.25, gamma=2, reduction='mean').
    # C=8 -> fold factor 16, single (4, 128) lane-dense tile.
    n1, c1 = 64, 8
    lp1 = jax.nn.log_softmax(jax.random.normal(k1, (n1, c1), jnp.float32), axis=-1)
    y1 = jax.random.randint(k2, (n1,), 0, c1, dtype=jnp.int32)
    out1 = focal_loss(lp1, y1)
    jax.block_until_ready(out1)
    _check("mean", out1, _focal_loss_ref(lp1, y1))

    # Case 2: per-class weights, reduction='sum', tiny tile_bytes to force a
    # multi-step "parallel" grid with a ragged final block (sentinel path).
    n2, c2 = 2056, 16
    lp2 = jax.nn.log_softmax(jax.random.normal(k3, (n2, c2), jnp.float32), axis=-1)
    y2 = jax.random.randint(k4, (n2,), 0, c2, dtype=jnp.int32)
    w2 = jax.random.uniform(k5, (c2,), jnp.float32, 0.5, 1.5)
    out2 = focal_loss(lp2, y2, w2, reduction="sum", tile_bytes=4096)
    jax.block_until_ready(out2)
    _check("sum", out2, _focal_loss_ref(lp2, y2, w2, reduction="sum"))

    # Case 3: bf16 log-probs streamed without wrapper upcast, C that does not
    # divide 128 (fold factor 12, lane width 120), and N % f != 0 (fold pad).
    n3, c3 = 250, 10
    lp3 = jax.nn.log_softmax(jax.random.normal(k6, (n3, c3), jnp.float32),
                             axis=-1).astype(jnp.bfloat16)
    y3 = jax.random.randint(k7, (n3,), 0, c3, dtype=jnp.int32)
    out3 = focal_loss(lp3, y3, alpha=0.5, gamma=3)
    jax.block_until_ready(out3)
    _check("bf16 mean", out3, _focal_loss_ref(lp3, y3, alpha=0.5, gamma=3))

    print("KERNEL_OK")
</pallas_src>

<mosaic_0001>
module attributes {stable_mosaic.version = 11 : i64} {
  func.func @_focal_loss_kernel(%arg0: i32, %arg1: memref<4x128xf32, #tpu.memory_space<vmem>>, %arg2: memref<4x16xf32, #tpu.memory_space<vmem>>, %arg3: memref<1x128xf32, #tpu.memory_space<vmem>>, %arg4: memref<16x128xf32, #tpu.memory_space<vmem>>, %arg5: memref<128x16xf32, #tpu.memory_space<vmem>>, %arg6: memref<8x128xf32, #tpu.memory_space<vmem>>) attributes {dimension_semantics = [#tpu.dimension_semantics<parallel>], iteration_bounds = array<i64: 1>, scalar_prefetch = 0 : i64, scratch_operands = 0 : i64, tpu.core_type = #tpu.core_type<tc>, window_params = [{transform_indices = @transform_0, window_bounds = array<i64: 4, 128>}, {transform_indices = @transform_1, window_bounds = array<i64: 4, 16>}, {pipeline_mode = #tpu.pipeline_mode<synchronous>, transform_indices = @transform_2, window_bounds = array<i64: 1, 128>}, {pipeline_mode = #tpu.pipeline_mode<synchronous>, transform_indices = @transform_3, window_bounds = array<i64: 16, 128>}, {pipeline_mode = #tpu.pipeline_mode<synchronous>, transform_indices = @transform_4, window_bounds = array<i64: 128, 16>}, {transform_indices = @transform_5, window_bounds = array<i64: 8, 128>}]} {
    %c0 = arith.constant 0 : index
    %c0_0 = arith.constant 0 : index
    %0 = vector.load %arg1[%c0, %c0_0] : memref<4x128xf32, #tpu.memory_space<vmem>>, vector<4x128xf32>
    %c0_1 = arith.constant 0 : index
    %c0_2 = arith.constant 0 : index
    %1 = vector.load %arg2[%c0_1, %c0_2] : memref<4x16xf32, #tpu.memory_space<vmem>>, vector<4x16xf32>
    %c0_3 = arith.constant 0 : index
    %c0_4 = arith.constant 0 : index
    %2 = vector.load %arg3[%c0_3, %c0_4] : memref<1x128xf32, #tpu.memory_space<vmem>>, vector<1x128xf32>
    %c0_5 = arith.constant 0 : index
    %c0_6 = arith.constant 0 : index
    %3 = vector.load %arg4[%c0_5, %c0_6] : memref<16x128xf32, #tpu.memory_space<vmem>>, vector<16x128xf32>
    %c0_7 = arith.constant 0 : index
    %c0_8 = arith.constant 0 : index
    %4 = vector.load %arg5[%c0_7, %c0_8] : memref<128x16xf32, #tpu.memory_space<vmem>>, vector<128x16xf32>
    %cst = arith.constant dense<0.000000e+00> : vector<4x128xf32>
    %5 = tpu.matmul %1, %3, %cst {dimension_numbers = #tpu.dot_dimension_numbers<[1], [0], [0], [1], [0, 0, 1, 1], [], []>} : vector<4x16xf32>, vector<16x128xf32>, vector<4x128xf32> -> vector<4x128xf32>
    %6 = tpu.iota {dimensions = array<i32: 1>} : vector<4x128xi32>
    %7 = arith.sitofp %6 : vector<4x128xi32> to vector<4x128xf32>
    %8 = arith.cmpf oeq, %7, %5 : vector<4x128xf32>
    %9 = vector.broadcast %2 : vector<1x128xf32> to vector<4x128xf32>
    %10 = arith.mulf %0, %9 : vector<4x128xf32>
    %cst_9 = arith.constant 0.000000e+00 : f32
    %11 = vector.broadcast %cst_9 : f32 to vector<4x128xf32>
    %12 = arith.select %8, %10, %11 : vector<4x128xi1>, vector<4x128xf32>
    %cst_10 = arith.constant dense<0.000000e+00> : vector<4x16xf32>
    %13 = tpu.matmul %12, %4, %cst_10 {dimension_numbers = #tpu.dot_dimension_numbers<[1], [0], [0], [1], [0, 0, 1, 1], [], []>} : vector<4x128xf32>, vector<128x16xf32>, vector<4x16xf32> -> vector<4x16xf32>
    %cst_11 = arith.constant 0.000000e+00 : f32
    %14 = vector.broadcast %cst_11 : f32 to vector<4x16xf32>
    %15 = arith.subf %14, %13 : vector<4x16xf32>
    %16 = math.exp %13 : vector<4x16xf32>
    %cst_12 = arith.constant 1.000000e+00 : f32
    %17 = vector.broadcast %cst_12 : f32 to vector<4x16xf32>
    %18 = arith.subf %17, %16 : vector<4x16xf32>
    %19 = arith.mulf %18, %18 : vector<4x16xf32>
    %cst_13 = arith.constant 2.500000e-01 : f32
    %20 = vector.broadcast %cst_13 : f32 to vector<4x16xf32>
    %21 = arith.mulf %20, %19 : vector<4x16xf32>
    %22 = arith.mulf %21, %15 : vector<4x16xf32>
    %23 = vector.shape_cast %22 : vector<4x16xf32> to vector<1x4x16xf32>
    %cst_14 = arith.constant dense<0.000000e+00> : vector<1xf32>
    %24 = vector.multi_reduction <add>, %23, %cst_14 [1, 2] : vector<1x4x16xf32> to vector<1xf32>
    %25 = vector.shape_cast %24 : vector<1xf32> to vector<1x1x1xf32>
    %26 = vector.extract %25[0, 0, 0] : f32 from vector<1x1x1xf32>
    %27 = vector.broadcast %26 : f32 to vector<1x1xf32>
    %28 = vector.shape_cast %27 : vector<1x1xf32> to vector<1x1xf32>
    %29 = vector.broadcast %28 : vector<1x1xf32> to vector<8x128xf32>
    %c0_15 = arith.constant 0 : index
    %c0_16 = arith.constant 0 : index
    %30 = vector.load %arg6[%c0_15, %c0_16] : memref<8x128xf32, #tpu.memory_space<vmem>>, vector<8x128xf32>
    tpu.vector_store %arg6[%c0_15, %c0_16], %29 {strides = array<i32>} : memref<8x128xf32, #tpu.memory_space<vmem>>, vector<8x128xf32>,
    return
  }
  func.func @transform_0(%arg0: i32) -> (i32, i32) {
    %c0_i32 = arith.constant 0 : i32
    %c0_i32_0 = arith.constant 0 : i32
    return %arg0, %c0_i32 : i32, i32
  }
  func.func @transform_1(%arg0: i32) -> (i32, i32) {
    %c0_i32 = arith.constant 0 : i32
    %c0_i32_0 = arith.constant 0 : i32
    return %arg0, %c0_i32 : i32, i32
  }
  func.func @transform_2(%arg0: i32) -> (i32, i32) {
    %c0_i32 = arith.constant 0 : i32
    %c0_i32_0 = arith.constant 0 : i32
    %c0_i32_1 = arith.constant 0 : i32
    return %c0_i32, %c0_i32_0 : i32, i32
  }
  func.func @transform_3(%arg0: i32) -> (i32, i32) {
    %c0_i32 = arith.constant 0 : i32
    %c0_i32_0 = arith.constant 0 : i32
    %c0_i32_1 = arith.constant 0 : i32
    return %c0_i32, %c0_i32_0 : i32, i32
  }
  func.func @transform_4(%arg0: i32) -> (i32, i32) {
    %c0_i32 = arith.constant 0 : i32
    %c0_i32_0 = arith.constant 0 : i32
    %c0_i32_1 = arith.constant 0 : i32
    return %c0_i32, %c0_i32_0 : i32, i32
  }
  func.func @transform_5(%arg0: i32) -> (i32, i32) {
    %c0_i32 = arith.constant 0 : i32
    %c0_i32_0 = arith.constant 0 : i32
    return %arg0, %c0_i32 : i32, i32
  }
}

</mosaic_0001>

<llo_original>
// kernel: focal_loss.1
$region0: #{focal_loss.1}
  #allocation0 [shape = 'u32[]', space=smem, size = 0x4, offset = 0x4, fixed_abs, tag = 'smem constant byte address 0x4 - core index']
  #allocation1 [shape = 'u32[144,128]{1,0:T(1,128)}', space=vmem, size = 0x12000, scoped, tag = 'internal scratch']
  %s0 = inlined_call_operand.vmem [shape: f32[4,128], index: 0, kind: input, shape index: {}]
  %s1 = inlined_call_operand.vmem [shape: f32[4,16], index: 1, kind: input, shape index: {}]
  %s2 = inlined_call_operand.vmem [shape: f32[1,128], index: 2, kind: input, shape index: {}]
  %s3 = inlined_call_operand.vmem [shape: f32[16,128], index: 3, kind: input, shape index: {}]
  %s4 = inlined_call_operand.vmem [shape: f32[128,16], index: 4, kind: input, shape index: {}]
  %s5 = inlined_call_operand.vmem [shape: f32[8,128], index: 5, kind: output, shape index: {}]
  %s6 = sld [smem:[#allocation0]]
  $region30: #{focal_loss.1} parent=0
    _
  %s8 = ssub.s32 1, %s6
  %s9 = scalar_select 0, %s8, %s6
  // Predicated region
  $region2: #{focal_loss.1} parent=0 // pred_check
    _
  $region3: #{focal_loss.1} parent=0 // pred_check_branch
    %11 = sbr.rel (0) target = $region5
  $region4: #{focal_loss.1} parent=0 // pred_region
    _
  $region5: #{focal_loss.1} parent=0 // pred_fallthru
    _
  // Predicated region
  $region6: #{focal_loss.1} parent=0 // pred_check
    _
  $region7: #{focal_loss.1} parent=0 // pred_check_branch
    %13 = sbr.rel (0) target = $region9
  $region8: #{focal_loss.1} parent=0 // pred_region
    _
  $region9: #{focal_loss.1} parent=0 // pred_fallthru
    _
  // Predicated region
  $region10: #{focal_loss.1} parent=0 // pred_check
    _
  $region11: #{focal_loss.1} parent=0 // pred_check_branch
    %15 = sbr.rel (0) target = $region13
  $region12: #{focal_loss.1} parent=0 // pred_region
    _
  $region13: #{focal_loss.1} parent=0 // pred_fallthru
    _
  // Predicated region
  $region14: #{focal_loss.1} parent=0 // pred_check
    _
  $region15: #{focal_loss.1} parent=0 // pred_check_branch
    %17 = sbr.rel (0) target = $region17
  $region16: #{focal_loss.1} parent=0 // pred_region
    _
  $region17: #{focal_loss.1} parent=0 // pred_fallthru
    _
  // Predicated region
  $region18: #{focal_loss.1} parent=0 // pred_check
    _
  $region19: #{focal_loss.1} parent=0 // pred_check_branch
    %19 = sbr.rel (0) target = $region21
  $region20: #{focal_loss.1} parent=0 // pred_region
    _
  $region21: #{focal_loss.1} parent=0 // pred_fallthru
    _
  %v20 = vld [vmem:[%s0] sm:$0xf]
  %v21 = vld [vmem:[%s1] sm:$0xf]
  %v22 = vld [vmem:[%s2] sm:$0x1]
  %v23 = vld [vmem:[%s3] sm:$0xff]
  %v24 = vld [vmem:[%s3 + $0x8] sm:$0xff]
  %v25 = vld [vmem:[%s4] sm:$0xff]
  %v26 = vld [vmem:[%s4 + $0x8] sm:$0xff]
  %v27 = vld [vmem:[%s4 + $0x10] sm:$0xff]
  %v28 = vld [vmem:[%s4 + $0x18] sm:$0xff]
  %v29 = vld [vmem:[%s4 + $0x20] sm:$0xff]
  %v30 = vld [vmem:[%s4 + $0x28] sm:$0xff]
  %v31 = vld [vmem:[%s4 + $0x30] sm:$0xff]
  %v32 = vld [vmem:[%s4 + $0x38] sm:$0xff]
  %v33 = vld [vmem:[%s4 + $0x40] sm:$0xff]
  %v34 = vld [vmem:[%s4 + $0x48] sm:$0xff]
  %v35 = vld [vmem:[%s4 + $0x50] sm:$0xff]
  %v36 = vld [vmem:[%s4 + $0x58] sm:$0xff]
  %v37 = vld [vmem:[%s4 + $0x60] sm:$0xff]
  %v38 = vld [vmem:[%s4 + $0x68] sm:$0xff]
  %v39 = vld [vmem:[%s4 + $0x70] sm:$0xff]
  %v40 = vld [vmem:[%s4 + $0x78] sm:$0xff]
  %vm41 = vcmask 130048
  %v43 = vsel %vm41, %v21, 0
  %45 = vmatprep.subr.mxu0 0.0
  %46 = vmatpush1.msra.mxu0 %v23
  %47 = vmatprep.subr.mxu0 0.0
  %48 = vmatpush1.msra.mxu0 %v24
  %49 = vmatprep.subr.mxu0 0.0
  %50 = vmatpush1.msra.mxu0 0.0
  %51 = vmatprep.subr.mxu0 0.0
  %52 = vmatpush1.msra.mxu0 0.0
  %53 = vmatprep.subr.mxu0 0.0
  %54 = vmatpush1.msra.mxu0 0.0
  %55 = vmatprep.subr.mxu0 0.0
  %56 = vmatpush1.msra.mxu0 0.0
  %57 = vmatprep.subr.mxu0 0.0
  %58 = vmatpush1.msra.mxu0 0.0
  %59 = vmatprep.subr.mxu0 0.0
  %60 = vmatpush1.msra.mxu0 0.0
  %61 = vmatprep.subr.mxu0 0.0
  %62 = vmatpush1.msra.mxu0 0.0
  %63 = vmatprep.subr.mxu0 0.0
  %64 = vmatpush1.msra.mxu0 0.0
  %65 = vmatprep.subr.mxu0 0.0
  %66 = vmatpush1.msra.mxu0 0.0
  %67 = vmatprep.subr.mxu0 0.0
  %68 = vmatpush1.msra.mxu0 0.0
  %69 = vmatprep.subr.mxu0 0.0
  %70 = vmatpush1.msra.mxu0 0.0
  %71 = vmatprep.subr.mxu0 0.0
  %72 = vmatpush1.msra.mxu0 0.0
  %73 = vmatprep.subr.mxu0 0.0
  %74 = vmatpush1.msra.mxu0 0.0
  %75 = vmatprep.subr.mxu0 0.0
  %76 = vmatpush1.msra.mxu0 0.0
  %77 = vmatprep.subr.mxu0 0.0
  %78 = vmatpush1.msra.mxu0 0.0
  %79 = vmatprep.subr.mxu0 0.0
  %80 = vmatpush1.msra.mxu0 0.0
  %81 = vmatprep.subr.mxu0 0.0
  %82 = vmatpush1.msra.mxu0 0.0
  %83 = vmatprep.subr.mxu0 0.0
  %84 = vmatpush1.msra.mxu0 0.0
  %85 = vmatprep.subr.mxu0 0.0
  %86 = vmatpush1.msra.mxu0 0.0
  %87 = vmatprep.subr.mxu0 0.0
  %88 = vmatpush1.msra.mxu0 0.0
  %89 = vmatprep.subr.mxu0 0.0
  %90 = vmatpush1.msra.mxu0 0.0
  %91 = vmatprep.subr.mxu0 0.0
  %92 = vmatpush1.msra.mxu0 0.0
  %93 = vmatprep.subr.mxu0 0.0
  %94 = vmatpush1.msra.mxu0 0.0
  %95 = vmatprep.subr.mxu0 0.0
  %96 = vmatpush1.msra.mxu0 0.0
  %97 = vmatprep.subr.mxu0 0.0
  %98 = vmatpush1.msra.mxu0 0.0
  %99 = vmatprep.subr.mxu0 0.0
  %100 = vmatpush1.msra.mxu0 0.0
  %101 = vmatprep.subr.mxu0 0.0
  %102 = vmatpush1.msra.mxu0 0.0
  %103 = vmatprep.subr.mxu0 0.0
  %104 = vmatpush1.msra.mxu0 0.0
  %105 = vmatprep.subr.mxu0 0.0
  %106 = vmatpush1.msra.mxu0 0.0
  %107 = vmatprep.subr.mxu0 0.0
  %108 = vmatpush1.msra.mxu0 0.0
  %109 = vmatprep.mubr.f32.mxu0 0.0
  %110 = vmatmul.mubr.f32.gmra.mrb[0].mxu0 %v43
  %v111 = vpop.f32.mrb[0].mxu0
  %v112 = vadd.f32 0.0, %v111
  %v113 = vpop.f32.mrb[0].mxu0
  %114 = vdwg.mxu0
  %v115 = vlaneseq
  %v116 = vand.u32 %v115, 127
  %v117 = vcvt.s32.f32 %v116
  %vm118 = vcmp.eq.f32.partialorder %v117, %v112
  %v120 = vlaneseq
  %v121 = vshrl.u32 %v120, 7
  %v122 = vsub.s32 0, %v121
  %v123 = vrot.slane %v22, %v122
  %v125 = vmul.f32 %v20, %v123
  %v126 = vsel %vm118, %v125, 0.0
  %127 = vmatprep.subr.mxu0 0.0
  %128 = vmatpush1.msra.mxu0 %v25
  %129 = vmatprep.subr.mxu0 0.0
  %130 = vmatpush1.msra.mxu0 %v26
  %131 = vmatprep.subr.mxu0 0.0
  %132 = vmatpush1.msra.mxu0 %v27
  %133 = vmatprep.subr.mxu0 0.0
  %134 = vmatpush1.msra.mxu0 %v28
  %135 = vmatprep.subr.mxu0 0.0
  %136 = vmatpush1.msra.mxu0 %v29
  %137 = vmatprep.subr.mxu0 0.0
  %138 = vmatpush1.msra.mxu0 %v30
  %139 = vmatprep.subr.mxu0 0.0
  %140 = vmatpush1.msra.mxu0 %v31
  %141 = vmatprep.subr.mxu0 0.0
  %142 = vmatpush1.msra.mxu0 %v32
  %143 = vmatprep.subr.mxu0 0.0
  %144 = vmatpush1.msra.mxu0 %v33
  %145 = vmatprep.subr.mxu0 0.0
  %146 = vmatpush1.msra.mxu0 %v34
  %147 = vmatprep.subr.mxu0 0.0
  %148 = vmatpush1.msra.mxu0 %v35
  %149 = vmatprep.subr.mxu0 0.0
  %150 = vmatpush1.msra.mxu0 %v36
  %151 = vmatprep.subr.mxu0 0.0
  %152 = vmatpush1.msra.mxu0 %v37
  %153 = vmatprep.subr.mxu0 0.0
  %154 = vmatpush1.msra.mxu0 %v38
  %155 = vmatprep.subr.mxu0 0.0
  %156 = vmatpush1.msra.mxu0 %v39
  %157 = vmatprep.subr.mxu0 0.0
  %158 = vmatpush1.msra.mxu0 %v40
  %159 = vmatprep.subr.mxu0 0.0
  %160 = vmatpush1.msra.mxu0 0.0
  %161 = vmatprep.subr.mxu0 0.0
  %162 = vmatpush1.msra.mxu0 0.0
  %163 = vmatprep.subr.mxu0 0.0
  %164 = vmatpush1.msra.mxu0 0.0
  %165 = vmatprep.subr.mxu0 0.0
  %166 = vmatpush1.msra.mxu0 0.0
  %167 = vmatprep.subr.mxu0 0.0
  %168 = vmatpush1.msra.mxu0 0.0
  %169 = vmatprep.subr.mxu0 0.0
  %170 = vmatpush1.msra.mxu0 0.0
  %171 = vmatprep.subr.mxu0 0.0
  %172 = vmatpush1.msra.mxu0 0.0
  %173 = vmatprep.subr.mxu0 0.0
  %174 = vmatpush1.msra.mxu0 0.0
  %175 = vmatprep.subr.mxu0 0.0
  %176 = vmatpush1.msra.mxu0 0.0
  %177 = vmatprep.subr.mxu0 0.0
  %178 = vmatpush1.msra.mxu0 0.0
  %179 = vmatprep.subr.mxu0 0.0
  %180 = vmatpush1.msra.mxu0 0.0
  %181 = vmatprep.subr.mxu0 0.0
  %182 = vmatpush1.msra.mxu0 0.0
  %183 = vmatprep.subr.mxu0 0.0
  %184 = vmatpush1.msra.mxu0 0.0
  %185 = vmatprep.subr.mxu0 0.0
  %186 = vmatpush1.msra.mxu0 0.0
  %187 = vmatprep.subr.mxu0 0.0
  %188 = vmatpush1.msra.mxu0 0.0
  %189 = vmatprep.subr.mxu0 0.0
  %190 = vmatpush1.msra.mxu0 0.0
  %191 = vmatprep.mubr.f32.mxu0 0.0
  %192 = vmatmul.mubr.f32.gmra.mrb[0].mxu0 %v126
  %v193 = vpop.f32.mrb[0].mxu0
  %v194 = vadd.f32 0.0, %v193
  %v195 = vpop.f32.mrb[0].mxu0
  %196 = vdwg.mxu0
  %v197 = vsub.f32 0.0, %v194
  %v198 = vmul.f32 %v194, 1.442695
  %v199 = vpow.pop %v198
  %v200 = vsub.f32 1.0, %v199
  %v201 = vmul.f32 %v200, %v200
  %v202 = vmul.f32 %v201, 0.25
  %v203 = vmul.f32 %v202, %v197
  %vm204 = vcmask 125952
  %v205 = vsel %vm204, %v203, 0.0
  %206 = vadd.xlane.f32.xlu0 %v205
  %v207 = vpop.xlane.xlu0 %206
  %v208 = vrot.slane %v207, 4
  %v209 = vadd.f32 %v207, %v208
  %v210 = vrot.slane %v209, 2
  %v211 = vadd.f32 %v209, %v210
  %v212 = vrot.slane %v211, 1
  %v213 = vadd.f32 %v211, %v212
  %s214 = vtos %v213
  %v215 = vstv %s214
  %216 = vst [vmem:[%s5] sm:$0xff] %v215
  // Predicated region
  $region22: #{focal_loss.1} parent=0 // pred_check
    _
  $region23: #{focal_loss.1} parent=0 // pred_check_branch
    %218 = sbr.rel (0) target = $region25
  $region24: #{focal_loss.1} parent=0 // pred_region
    _
  $region25: #{focal_loss.1} parent=0 // pred_fallthru
    _
  // Predicated region
  $region26: #{focal_loss.1} parent=0 // pred_check
    _
  $region27: #{focal_loss.1} parent=0 // pred_check_branch
    %220 = sbr.rel (0) target = $region29
  $region28: #{focal_loss.1} parent=0 // pred_region
    _
  $region29: #{focal_loss.1} parent=0 // pred_fallthru
    _

</llo_original>
